<compile_context>
chip_gen: v6e
topology: v6e:2x2x1
jax: 0.10.0
libtpu: 0.0.40
codegen_flags: <defaults>
</compile_context>

<pallas_src>
import functools

import jax
import jax.numpy as jnp
from jax.experimental import pallas as pl
from jax.experimental.pallas import tpu as pltpu


# --------------------------------------------------------------------------- #
# Kernel
# --------------------------------------------------------------------------- #
def _local_relation_kernel(mask_ref, q_ref, k_ref, o_ref, *, W):
    """mask_ref: (9, HW) f32; q_ref/k_ref: (Bt, C, HW); o_ref: (Bt, 9, HW)."""
    bt, C, HW = q_ref.shape
    mask = mask_ref[...]                                   # (9, HW), 1.0 where the tap is in-image

    # Small static unroll over the folded batch elements (Bt is kept <= 8 by
    # the wrapper); each iteration is one dense multiply + one reduce.
    for b in range(bt):
        qb = q_ref[b].astype(jnp.float32)                  # (C, HW)  f32 compute
        kb = k_ref[b].astype(jnp.float32)                  # (C, HW)

        # 3x3 neighborhood as lane rotations of the flattened plane (XLU work,
        # overlaps the VPU multiplies).  k_shift[:, i] = k[:, (i + s) mod HW].
        shifted = []
        for p in range(9):
            dh, dw = p // 3 - 1, p % 3 - 1
            s = dh * W + dw
            shifted.append(kb if s == 0 else pltpu.roll(kb, shift=(-s) % HW, axis=1))

        # One dense (9*C, HW) value -> single broadcast multiply + single
        # channel reduce produces the whole (9, HW) energy at once.
        kstack = jnp.concatenate(shifted, axis=0).reshape(9, C, HW)
        energy = jnp.sum(qb[None, :, :] * kstack, axis=1)  # (9, HW) f32

        # Zero out-of-image taps (reproduces nn.Unfold's zero padding and kills
        # the wrapped-around roll values); sigmoid(0) = 0.5 matches PyTorch.
        o_ref[b] = jax.nn.sigmoid(energy * mask).astype(o_ref.dtype)


# --------------------------------------------------------------------------- #
# Wrapper helpers
# --------------------------------------------------------------------------- #
def _neighbor_mask(H, W):
    """(9, H*W) f32 mask: 1.0 where the 3x3 tap p lies inside the image."""
    hh, ww = jnp.meshgrid(jnp.arange(H), jnp.arange(W), indexing="ij")
    h = hh.reshape(-1)
    w = ww.reshape(-1)
    rows = []
    for p in range(9):
        dh, dw = p // 3 - 1, p % 3 - 1
        rows.append((h + dh >= 0) & (h + dh < H) & (w + dw >= 0) & (w + dw < W))
    return jnp.stack(rows, axis=0).astype(jnp.float32)


def _choose_block_batch(B, C, HW, itemsize, max_unroll=8):
    """Fold batch elements per grid step: ~0.5 MiB/step, >= 2 steps (megacore)."""
    target_bytes = 512 * 1024
    per_b = 2 * C * HW * itemsize                           # q + k bytes per batch element
    bt = max(1, min(max_unroll, target_bytes // max(per_b, 1), B))
    while bt > 1 and (B % bt != 0 or B // bt < 2):
        bt -= 1
    return bt


@functools.lru_cache(maxsize=None)
def _vmem_limit_bytes():
    """Raise scoped VMEM above the 16/32 MiB defaults, stay under physical."""
    try:
        cap = pltpu.get_tpu_info().vmem_capacity_bytes
    except Exception:
        cap = 64 * 1024 * 1024                              # conservative (v7x physical)
    return int(min(100 * 1024 * 1024, cap * 3 // 4))


# --------------------------------------------------------------------------- #
# Public entry point
# --------------------------------------------------------------------------- #
def local_relation(q, k, *, layout="torch", block_batch=None):
    """q, k: (B, C, H, W).  layout="torch" -> (B*H*W, 1, 9); "native" -> (B, 9, H*W)."""
    B, C, H, W = q.shape
    HW = H * W
    bt = block_batch or _choose_block_batch(B, C, HW, jnp.dtype(q.dtype).itemsize)
    assert B % bt == 0, (B, bt)

    # Lane-dense layout: flatten the spatial plane into the last (lane) axis.
    q2 = q.reshape(B, C, HW)
    k2 = k.reshape(B, C, HW)
    mask = _neighbor_mask(H, W)                             # hoisted out of the kernel

    out = pl.pallas_call(
        functools.partial(_local_relation_kernel, W=W),
        out_shape=jax.ShapeDtypeStruct((B, 9, HW), q.dtype),
        grid_spec=pltpu.PrefetchScalarGridSpec(
            num_scalar_prefetch=0,
            grid=(B // bt,),
            in_specs=[
                pl.BlockSpec((9, HW), lambda b: (0, 0)),        # constant mask
                pl.BlockSpec((bt, C, HW), lambda b: (b, 0, 0)),  # q (bt batches/step)
                pl.BlockSpec((bt, C, HW), lambda b: (b, 0, 0)),  # k
            ],
            out_specs=pl.BlockSpec((bt, 9, HW), lambda b: (b, 0, 0)),
        ),
        compiler_params=pltpu.CompilerParams(
            dimension_semantics=("parallel",),
            vmem_limit_bytes=_vmem_limit_bytes(),
        ),
    )(mask, q2, k2)

    if layout == "native":
        return out                                          # (B, 9, H*W), lane-dense
    # PyTorch layout; relayout stays outside the kernel (in the storage dtype).
    return jnp.transpose(out, (0, 2, 1)).reshape(B * HW, 1, 9)


# --------------------------------------------------------------------------- #
# Pure-JAX reference (padded-window slicing, no Pallas)
# --------------------------------------------------------------------------- #
def local_relation_ref(q, k):
    B, C, H, W = q.shape
    k_pad = jnp.pad(k, ((0, 0), (0, 0), (1, 1), (1, 1)))
    outs = []
    for p in range(9):
        dh, dw = p // 3, p % 3
        kwin = k_pad[:, :, dh:dh + H, dw:dw + W]
        outs.append(jnp.sum(q * kwin, axis=1))               # (B, H, W)
    energy = jnp.stack(outs, axis=-1)                        # (B, H, W, 9)
    return jax.nn.sigmoid(energy).reshape(B * H * W, 1, 9)


if __name__ == "__main__":
    B, C, H, W = 2, 4, 16, 16
    key = jax.random.PRNGKey(0)
    kq, kk = jax.random.split(key)
    q = jax.random.normal(kq, (B, C, H, W), dtype=jnp.float32)
    k = jax.random.normal(kk, (B, C, H, W), dtype=jnp.float32)

    # f32 path vs reference (tight tolerance).
    out = jax.block_until_ready(local_relation(q, k))
    ref = jax.block_until_ready(local_relation_ref(q, k))
    assert out.shape == (B * H * W, 1, 9), out.shape
    assert jnp.allclose(out, ref, atol=1e-5, rtol=1e-5), "mismatch vs reference (f32)"

    # bf16 storage path (halved DMA bytes); channel sum + sigmoid stay f32.
    out_bf16 = jax.block_until_ready(
        local_relation(q.astype(jnp.bfloat16), k.astype(jnp.bfloat16)))
    assert out_bf16.dtype == jnp.bfloat16
    assert jnp.allclose(out_bf16.astype(jnp.float32), ref, atol=5e-2), \
        "mismatch vs reference (bf16 storage)"

    print("KERNEL_OK")
</pallas_src>

<mosaic_0001>
module attributes {stable_mosaic.version = 11 : i64} {
  func.func @_local_relation_kernel(%arg0: i32, %arg1: memref<9x256xf32, #tpu.memory_space<vmem>>, %arg2: memref<1x4x256xf32, #tpu.memory_space<vmem>>, %arg3: memref<1x4x256xf32, #tpu.memory_space<vmem>>, %arg4: memref<1x9x256xf32, #tpu.memory_space<vmem>>) attributes {dimension_semantics = [#tpu.dimension_semantics<parallel>], iteration_bounds = array<i64: 2>, scalar_prefetch = 0 : i64, scratch_operands = 0 : i64, tpu.core_type = #tpu.core_type<tc>, window_params = [{pipeline_mode = #tpu.pipeline_mode<synchronous>, transform_indices = @transform_0, window_bounds = array<i64: 9, 256>}, {transform_indices = @transform_1, window_bounds = array<i64: 1, 4, 256>}, {transform_indices = @transform_2, window_bounds = array<i64: 1, 4, 256>}, {transform_indices = @transform_3, window_bounds = array<i64: 1, 9, 256>}]} {
    %c0 = arith.constant 0 : index
    %c0_0 = arith.constant 0 : index
    %0 = vector.load %arg1[%c0, %c0_0] : memref<9x256xf32, #tpu.memory_space<vmem>>, vector<9x256xf32>
    %c0_1 = arith.constant 0 : index
    %c0_2 = arith.constant 0 : index
    %c0_3 = arith.constant 0 : index
    %1 = vector.load %arg2[%c0_1, %c0_2, %c0_3] : memref<1x4x256xf32, #tpu.memory_space<vmem>>, vector<1x4x256xf32>
    %2 = vector.shape_cast %1 : vector<1x4x256xf32> to vector<4x256xf32>
    %c0_4 = arith.constant 0 : index
    %c0_5 = arith.constant 0 : index
    %c0_6 = arith.constant 0 : index
    %3 = vector.load %arg3[%c0_4, %c0_5, %c0_6] : memref<1x4x256xf32, #tpu.memory_space<vmem>>, vector<1x4x256xf32>
    %4 = vector.shape_cast %3 : vector<1x4x256xf32> to vector<4x256xf32>
    %c17_i32 = arith.constant 17 : i32
    %5 = tpu.dynamic_rotate %4 by %c17_i32 dim 1 : vector<4x256xf32>, i32 -> vector<4x256xf32>
    %c16_i32 = arith.constant 16 : i32
    %6 = tpu.dynamic_rotate %4 by %c16_i32 dim 1 : vector<4x256xf32>, i32 -> vector<4x256xf32>
    %c15_i32 = arith.constant 15 : i32
    %7 = tpu.dynamic_rotate %4 by %c15_i32 dim 1 : vector<4x256xf32>, i32 -> vector<4x256xf32>
    %c1_i32 = arith.constant 1 : i32
    %8 = tpu.dynamic_rotate %4 by %c1_i32 dim 1 : vector<4x256xf32>, i32 -> vector<4x256xf32>
    %c255_i32 = arith.constant 255 : i32
    %9 = tpu.dynamic_rotate %4 by %c255_i32 dim 1 : vector<4x256xf32>, i32 -> vector<4x256xf32>
    %c241_i32 = arith.constant 241 : i32
    %10 = tpu.dynamic_rotate %4 by %c241_i32 dim 1 : vector<4x256xf32>, i32 -> vector<4x256xf32>
    %c240_i32 = arith.constant 240 : i32
    %11 = tpu.dynamic_rotate %4 by %c240_i32 dim 1 : vector<4x256xf32>, i32 -> vector<4x256xf32>
    %c239_i32 = arith.constant 239 : i32
    %12 = tpu.dynamic_rotate %4 by %c239_i32 dim 1 : vector<4x256xf32>, i32 -> vector<4x256xf32>
    %13 = tpu.concatenate %5, %6, %7, %8, %4, %9, %10, %11, %12 in 0 : vector<4x256xf32>, vector<4x256xf32>, vector<4x256xf32>, vector<4x256xf32>, vector<4x256xf32>, vector<4x256xf32>, vector<4x256xf32>, vector<4x256xf32>, vector<4x256xf32> -> vector<36x256xf32>
    %14 = vector.shape_cast %13 : vector<36x256xf32> to vector<9x4x256xf32>
    %15 = vector.shape_cast %2 : vector<4x256xf32> to vector<1x4x256xf32>
    %16 = vector.broadcast %15 : vector<1x4x256xf32> to vector<9x4x256xf32>
    %17 = arith.mulf %16, %14 : vector<9x4x256xf32>
    %cst = arith.constant dense<0.000000e+00> : vector<9x256xf32>
    %18 = vector.multi_reduction <add>, %17, %cst [1] : vector<9x4x256xf32> to vector<9x256xf32>
    %19 = arith.mulf %18, %0 : vector<9x256xf32>
    %20 = arith.negf %19 : vector<9x256xf32>
    %21 = math.exp %20 : vector<9x256xf32>
    %cst_7 = arith.constant 1.000000e+00 : f32
    %22 = vector.broadcast %cst_7 : f32 to vector<9x256xf32>
    %23 = arith.addf %22, %21 : vector<9x256xf32>
    %24 = arith.divf %22, %23 : vector<9x256xf32>
    %c0_8 = arith.constant 0 : index
    %c0_9 = arith.constant 0 : index
    %c0_10 = arith.constant 0 : index
    %25 = vector.load %arg4[%c0_8, %c0_9, %c0_10] : memref<1x9x256xf32, #tpu.memory_space<vmem>>, vector<1x9x256xf32>
    %26 = vector.shape_cast %25 : vector<1x9x256xf32> to vector<9x256xf32>
    %27 = vector.shape_cast %24 : vector<9x256xf32> to vector<1x9x256xf32>
    tpu.vector_store %arg4[%c0_8, %c0_9, %c0_10], %27 {strides = array<i32>} : memref<1x9x256xf32, #tpu.memory_space<vmem>>, vector<1x9x256xf32>,
    return
  }
  func.func @transform_0(%arg0: i32) -> (i32, i32) {
    %c0_i32 = arith.constant 0 : i32
    %c0_i32_0 = arith.constant 0 : i32
    %c0_i32_1 = arith.constant 0 : i32
    return %c0_i32, %c0_i32_0 : i32, i32
  }
  func.func @transform_1(%arg0: i32) -> (i32, i32, i32) {
    %c0_i32 = arith.constant 0 : i32
    %c0_i32_0 = arith.constant 0 : i32
    %c0_i32_1 = arith.constant 0 : i32
    return %arg0, %c0_i32, %c0_i32_0 : i32, i32, i32
  }
  func.func @transform_2(%arg0: i32) -> (i32, i32, i32) {
    %c0_i32 = arith.constant 0 : i32
    %c0_i32_0 = arith.constant 0 : i32
    %c0_i32_1 = arith.constant 0 : i32
    return %arg0, %c0_i32, %c0_i32_0 : i32, i32, i32
  }
  func.func @transform_3(%arg0: i32) -> (i32, i32, i32) {
    %c0_i32 = arith.constant 0 : i32
    %c0_i32_0 = arith.constant 0 : i32
    %c0_i32_1 = arith.constant 0 : i32
    return %arg0, %c0_i32, %c0_i32_0 : i32, i32, i32
  }
}

</mosaic_0001>

<llo_original>
// kernel: tpu_custom_call.1
$region0: #{tpu_custom_call.1}
  #allocation0 [shape = 'u32[]', space=smem, size = 0x4, offset = 0x4, fixed_abs, tag = 'smem constant byte address 0x4 - core index']
  #allocation1 [shape = 'u32[144,128]{1,0:T(1,128)}', space=vmem, size = 0x12000, scoped, tag = 'internal scratch']
  %s0 = inlined_call_operand.hbm [shape: f32[9,256], index: 0, kind: input, shape index: {}]
  %s1 = inlined_call_operand.hbm [shape: f32[2,4,256], index: 1, kind: input, shape index: {}]
  %s2 = inlined_call_operand.hbm [shape: f32[2,4,256], index: 2, kind: input, shape index: {}]
  %s3 = inlined_call_operand.vmem [shape: f32[2,9,256], index: 3, kind: output, shape index: {}]
  %s4 = sld [smem:[#allocation0]]
  $region57: #{tpu_custom_call.1} parent=0
    _
  %s6 = ssub.s32 1, %s4
  %s7 = scalar_select 0, %s6, %s4
  $region1: #{tpu_custom_call.1} parent=0
    #allocation2 [shape = 'u8[16384]{0}', space=vmem, size = 0x4000, scoped, tag = 'input window, operand 0, single buffered']
    #allocation3 [shape = 's32[2]{0}', space=sflag, size = 0x8, scoped, tag = 'scoped memory for tpu_custom_call.1']
    #allocation4 [shape = 'u8[8192]{0}', space=vmem, size = 0x2000, scoped, tag = 'input window, operand 1']
    #allocation5 [shape = 's32[2]{0}', space=sflag, size = 0x8, scoped, tag = 'scoped memory for tpu_custom_call.1']
    #allocation6 [shape = 'u8[8192]{0}', space=vmem, size = 0x2000, scoped, tag = 'input window, operand 2']
    %8 = vsyncpa [#allocation3], 0
    %9 = vsyncpa [#allocation5], 0
    %s10 = scalar_lea.sflag [#allocation5], 1
    %11 = vsyncpa %s10, 0
    loop: start=0, step=1, limit=4
    $region2: #{tpu_custom_call.1} parent=1 // loop_pre_header
      _
    $region3: #{tpu_custom_call.1} parent=1 // loop_header
      %s13 = sphi 0, %s17
      %p14 = scmp.ge.s32.totalorder %s13, 4
      %s21 = sphi 0, %s21
      %s23 = sphi 0, %s21
      %s24 = sphi 0, %s23
      %s38 = sphi 0, %s24
      %s44 = sphi 0, %s46
      %s47 = sphi 0, %s44
      %s48 = sphi 0, %s47
      %s64 = sphi 0, %s48
      %s70 = sphi 0, %s72
      %s73 = sphi 0, %s70
      %s74 = sphi 0, %s73
      %s90 = sphi 0, %s74
      %s96 = sphi 0, %s98
      %s99 = sphi 0, %s96
      %s100 = sphi 0, %s99
      %s116 = sphi 0, %s100
    $region4: #{tpu_custom_call.1} parent=1 // loop_header_branch
      %16 = sbr.rel (%p14) target = $region8
    $region5: #{tpu_custom_call.1} parent=1 // loop_body
      %s18 = ssub.s32 %s13, 1
      %s19 = ssub.s32 %s13, 2
      %s20 = sadd.s32 %s13, 1
      %s22 = sadd.s32 %s21, 1
      %p25 = scmp.eq.s32.totalorder %s13, 1
      %p26 = scmp.ne.s32.totalorder %s21, %s23
      %p27 = scmp.eq.s32.totalorder %s13, 0
      %p28 = por %p26, %p27
      %p29 = scmp.ne.s32.totalorder %s21, %s23
      %p30 = scmp.eq.s32.totalorder %s18, 1
      %p31 = por %p29, %p30
      %p32 = scmp.ne.s32.totalorder %s23, %s24
      %p33 = scmp.eq.s32.totalorder %s18, 0
      %p34 = por %p32, %p33
      %p35 = scmp.ne.s32.totalorder %s23, %s24
      %p36 = scmp.eq.s32.totalorder %s19, 1
      %p37 = por %p35, %p36
      %p39 = scmp.ne.s32.totalorder %s24, %s38
      %p40 = scmp.eq.s32.totalorder %s19, 0
      %p41 = por %p39, %p40
      %s42 = ssub.s32 %s13, %s20
      %p43 = scmp.eq.s32.totalorder %s42, 0
      %s45 = sadd.s32 %s44, 1
      %s46 = scalar_select %p43, %s44, %s45
      %p49 = pneg %p43
      %p50 = scmp.eq.s32.totalorder %s13, 1
      %p51 = por %p49, %p50
      %p52 = scmp.ne.s32.totalorder %s44, %s47
      %p53 = scmp.eq.s32.totalorder %s13, 0
      %p54 = por %p52, %p53
      %p55 = scmp.ne.s32.totalorder %s44, %s47
      %p56 = scmp.eq.s32.totalorder %s18, 1
      %p57 = por %p55, %p56
      %p58 = scmp.ne.s32.totalorder %s47, %s48
      %p59 = scmp.eq.s32.totalorder %s18, 0
      %p60 = por %p58, %p59
      %p61 = scmp.ne.s32.totalorder %s47, %s48
      %p62 = scmp.eq.s32.totalorder %s19, 1
      %p63 = por %p61, %p62
      %p65 = scmp.ne.s32.totalorder %s48, %s64
      %p66 = scmp.eq.s32.totalorder %s19, 0
      %p67 = por %p65, %p66
      %s68 = ssub.s32 %s13, %s20
      %p69 = scmp.eq.s32.totalorder %s68, 0
      %s71 = sadd.s32 %s70, 1
      %s72 = scalar_select %p69, %s70, %s71
      %p75 = pneg %p69
      %p76 = scmp.eq.s32.totalorder %s13, 1
      %p77 = por %p75, %p76
      %p78 = scmp.ne.s32.totalorder %s70, %s73
      %p79 = scmp.eq.s32.totalorder %s13, 0
      %p80 = por %p78, %p79
      %p81 = scmp.ne.s32.totalorder %s70, %s73
      %p82 = scmp.eq.s32.totalorder %s18, 1
      %p83 = por %p81, %p82
      %p84 = scmp.ne.s32.totalorder %s73, %s74
      %p85 = scmp.eq.s32.totalorder %s18, 0
      %p86 = por %p84, %p85
      %p87 = scmp.ne.s32.totalorder %s73, %s74
      %p88 = scmp.eq.s32.totalorder %s19, 1
      %p89 = por %p87, %p88
      %p91 = scmp.ne.s32.totalorder %s74, %s90
      %p92 = scmp.eq.s32.totalorder %s19, 0
      %p93 = por %p91, %p92
      %s94 = ssub.s32 %s13, %s20
      %p95 = scmp.eq.s32.totalorder %s94, 0
      %s97 = sadd.s32 %s96, 1
      %s98 = scalar_select %p95, %s96, %s97
      %p101 = pneg %p95
      %p102 = scmp.eq.s32.totalorder %s13, 1
      %p103 = por %p101, %p102
      %p104 = scmp.ne.s32.totalorder %s96, %s99
      %p105 = scmp.eq.s32.totalorder %s13, 0
      %p106 = por %p104, %p105
      %p107 = scmp.ne.s32.totalorder %s96, %s99
      %p108 = scmp.eq.s32.totalorder %s18, 1
      %p109 = por %p107, %p108
      %p110 = scmp.ne.s32.totalorder %s99, %s100
      %p111 = scmp.eq.s32.totalorder %s18, 0
      %p112 = por %p110, %p111
      %p113 = scmp.ne.s32.totalorder %s99, %s100
      %p114 = scmp.eq.s32.totalorder %s19, 1
      %p115 = por %p113, %p114
      %p117 = scmp.ne.s32.totalorder %s100, %s116
      %p118 = scmp.eq.s32.totalorder %s19, 0
      %p119 = por %p117, %p118
      %p120 = scmp.le.s32.totalorder 1, %s13
      %p121 = scmp.lt.s32.totalorder %s13, 3
      %p122 = pnand %p120, %p121
      %p123 = pneg %p122
      // Predicated region
      $region9: #{tpu_custom_call.1} parent=5 // pred_check
        _
      $region10: #{tpu_custom_call.1} parent=5 // pred_check_branch
        %125 = sbr.rel (%p122) target = $region12
      $region11: #{tpu_custom_call.1} parent=5 // pred_region
        %s126 = ssub.s32 %s13, 1
        // Predicated region
        $region13: #{tpu_custom_call.1} parent=11 // pred_check
          %p127 = pneg %p34
        $region14: #{tpu_custom_call.1} parent=11 // pred_check_branch
          %129 = sbr.rel (%p127) target = $region16
        $region15: #{tpu_custom_call.1} parent=11 // pred_region
          %s131 = ssub.s32 512, 512
          %132 = vsyncadd [#allocation3], %s131
          %s133 = sshll.u32 [#allocation2], 4
          %s134 = int_to_ptr.vmem [resolvable:$true] %s133
          %139 = dma.hbm_to_vmem [thread:$0]  %s0, 512, %s134, [#allocation3], 256, 256, 16
        $region16: #{tpu_custom_call.1} parent=11 // pred_fallthru
          _
      $region12: #{tpu_custom_call.1} parent=5 // pred_fallthru
        _
      %p140 = scmp.lt.s32.totalorder %s13, 2
      // Predicated region
      $region17: #{tpu_custom_call.1} parent=5 // pred_check
        %p141 = pneg %p140
      $region18: #{tpu_custom_call.1} parent=5 // pred_check_branch
        %143 = sbr.rel (%p141) target = $region20
      $region19: #{tpu_custom_call.1} parent=5 // pred_region
        // Predicated region
        $region21: #{tpu_custom_call.1} parent=19 // pred_check
          %p144 = pneg %p54
        $region22: #{tpu_custom_call.1} parent=19 // pred_check_branch
          %146 = sbr.rel (%p144) target = $region24
        $region23: #{tpu_custom_call.1} parent=19 // pred_region
          %s147 = sand.u32 %s13, 1
          %s148 = scalar_lea.sflag [#allocation5], %s147
          %s149 = sand.u32 %s44, 1
          %s150 = smul.addr %s149, 8
          %s151 = scalar_lea.vmem [#allocation4], %s150
          %s153 = ssub.s32 128, 128
          %154 = vsyncadd %s148, %s153
          %s155 = smul.addr %s13, 2
          %s156 = smul.addr %s155, 64
          %s157 = scalar_lea.hbm %s1, %s156
          %s159 = sshll.u32 %s151, 4
          %s160 = int_to_ptr.vmem [resolvable:$true] %s159
          %162 = dma.hbm_to_vmem [thread:$0]  %s157, 128, %s160, %s148
        $region24: #{tpu_custom_call.1} parent=19 // pred_fallthru
          _
        // Predicated region
        $region25: #{tpu_custom_call.1} parent=19 // pred_check
          %p163 = pneg %p80
        $region26: #{tpu_custom_call.1} parent=19 // pred_check_branch
          %165 = sbr.rel (%p163) target = $region28
        $region27: #{tpu_custom_call.1} parent=19 // pred_region
          %s166 = sand.u32 %s13, 1
          %s167 = scalar_lea.sflag [#allocation5], %s166
          %s168 = sand.u32 %s70, 1
          %s169 = smul.addr %s168, 8
          %s170 = scalar_lea.vmem [#allocation6], %s169
          %s172 = ssub.s32 128, 128
          %173 = vsyncadd %s167, %s172
          %s174 = smul.addr %s13, 2
          %s175 = smul.addr %s174, 64
          %s176 = scalar_lea.hbm %s2, %s175
          %s178 = sshll.u32 %s170, 4
          %s179 = int_to_ptr.vmem [resolvable:$true] %s178
          %181 = dma.hbm_to_vmem [thread:$0]  %s176, 128, %s179, %s167
        $region28: #{tpu_custom_call.1} parent=19 // pred_fallthru
          _
      $region20: #{tpu_custom_call.1} parent=5 // pred_fallthru
        _
      %p182 = scmp.le.s32.totalorder 1, %s13
      %p183 = scmp.lt.s32.totalorder %s13, 3
      %p184 = pnand %p182, %p183
      %p185 = pneg %p184
      // Predicated region
      $region29: #{tpu_custom_call.1} parent=5 // pred_check
        _
      $region30: #{tpu_custom_call.1} parent=5 // pred_check_branch
        %187 = sbr.rel (%p184) target = $region32
      $region31: #{tpu_custom_call.1} parent=5 // pred_region
        %s188 = ssub.s32 %s13, 1
        // Predicated region
        $region33: #{tpu_custom_call.1} parent=31 // pred_check
          %p189 = pneg %p34
        $region34: #{tpu_custom_call.1} parent=31 // pred_check_branch
          %191 = sbr.rel (%p189) target = $region36
        $region35: #{tpu_custom_call.1} parent=31 // pred_region
          %192 = dma.done [#allocation3], 512
        $region36: #{tpu_custom_call.1} parent=31 // pred_fallthru
          _
        %s193 = sand.u32 %s18, 1
        %s194 = scalar_lea.sflag [#allocation5], %s193
        %s195 = sand.u32 %s47, 1
        %s196 = smul.addr %s195, 8
        %s197 = scalar_lea.vmem [#allocation4], %s196
        // Predicated region
        $region37: #{tpu_custom_call.1} parent=31 // pred_check
          %p198 = pneg %p60
        $region38: #{tpu_custom_call.1} parent=31 // pred_check_branch
          %200 = sbr.rel (%p198) target = $region40
        $region39: #{tpu_custom_call.1} parent=31 // pred_region
          %201 = dma.done %s194, 128
        $region40: #{tpu_custom_call.1} parent=31 // pred_fallthru
          _
        %s202 = sand.u32 %s18, 1
        %s203 = scalar_lea.sflag [#allocation5], %s202
        %s204 = sand.u32 %s73, 1
        %s205 = smul.addr %s204, 8
        %s206 = scalar_lea.vmem [#allocation6], %s205
        // Predicated region
        $region41: #{tpu_custom_call.1} parent=31 // pred_check
          %p207 = pneg %p86
        $region42: #{tpu_custom_call.1} parent=31 // pred_check_branch
          %209 = sbr.rel (%p207) target = $region44
        $region43: #{tpu_custom_call.1} parent=31 // pred_region
          %210 = dma.done %s203, 128
        $region44: #{tpu_custom_call.1} parent=31 // pred_fallthru
          _
        %p211 = pneg %p34
        %p212 = pneg %p31
        %s213 = sand.u32 %s18, 1
        %s214 = scalar_lea.sflag [#allocation5], %s213
        %s215 = sand.u32 %s47, 1
        %s216 = smul.addr %s215, 8
        %s217 = scalar_lea.vmem [#allocation4], %s216
        %p218 = pneg %p60
        %p219 = pneg %p57
        %s220 = sand.u32 %s18, 1
        %s221 = scalar_lea.sflag [#allocation5], %s220
        %s222 = sand.u32 %s73, 1
        %s223 = smul.addr %s222, 8
        %s224 = scalar_lea.vmem [#allocation6], %s223
        %p225 = pneg %p86
        %p226 = pneg %p83
        %p227 = pneg %p112
        %p228 = pneg %p109
        %p229 = scmp.lt.s32.totalorder %s18, 1
        %s230 = scalar_select %p229, %s18, 1
        %s231 = smul.addr %s230, 4
        %s232 = smul.addr %s231, 8
        %s233 = scalar_lea.vmem %s3, %s232
        %p234 = scmp.lt.s32.totalorder %s18, 1
        %s235 = scalar_select %p234, %s18, 1
        %s236 = smul.addr %s235, 4
        %s237 = smul.addr %s236, 8
        %s238 = scalar_lea.vmem %s3, %s237
        %v239 = vld [vmem:[#allocation2] sm:$0xff]
        %v240 = vld [vmem:[#allocation2 + $0x8] sm:$0xff]
        %v241 = vld [vmem:[#allocation2 + $0x10] sm:$0x1]
        %v242 = vld [vmem:[#allocation2 + $0x18] sm:$0x1]
        %v243 = vld [vmem:[%s197] sm:$0xff]
        %v244 = vld [vmem:[%s206] sm:$0xff]
        %v246 = vcombine.high %v244, %v244
        %248 = vrot.lane.b32.xlu0 %v244, 17
        %v249 = vpop.permute.xlu0 %248
        %250 = vrot.lane.b32.xlu0 %v246, 17
        %v251 = vpop.permute.xlu0 %250
        %v252 = vlaneseq
        %v253 = vand.u32 %v252, 127
        %vm254 = vcmp.lt.s32.totalorder %v253, 17
        %v255 = vsel %vm254, %v249, %v251
        %v256 = vsel %vm254, %v251, %v249
        %257 = vrot.lane.b32.xlu0 %v244, 16
        %v258 = vpop.permute.xlu0 %257
        %259 = vrot.lane.b32.xlu0 %v246, 16
        %v260 = vpop.permute.xlu0 %259
        %vm261 = vcmp.lt.s32.totalorder %v253, 16
        %v262 = vsel %vm261, %v258, %v260
        %v263 = vsel %vm261, %v260, %v258
        %264 = vrot.lane.b32.xlu0 %v244, 15
        %v265 = vpop.permute.xlu0 %264
        %266 = vrot.lane.b32.xlu0 %v246, 15
        %v267 = vpop.permute.xlu0 %266
        %vm268 = vcmp.lt.s32.totalorder %v253, 15
        %v269 = vsel %vm268, %v265, %v267
        %v270 = vsel %vm268, %v267, %v265
        %271 = vrot.lane.b32.xlu0 %v244, 1
        %v272 = vpop.permute.xlu0 %271
        %273 = vrot.lane.b32.xlu0 %v246, 1
        %v274 = vpop.permute.xlu0 %273
        %vm275 = vcmp.lt.s32.totalorder %v253, 1
        %v276 = vsel %vm275, %v272, %v274
        %v277 = vsel %vm275, %v274, %v272
        %278 = vrot.lane.b32.xlu0 %v244, 127
        %v279 = vpop.permute.xlu0 %278
        %280 = vrot.lane.b32.xlu0 %v246, 127
        %v281 = vpop.permute.xlu0 %280
        %vm282 = vcmp.lt.s32.totalorder %v253, 127
        %v283 = vsel %vm282, %v279, %v281
        %v284 = vsel %vm282, %v281, %v279
        %285 = vrot.lane.b32.xlu0 %v244, 113
        %v286 = vpop.permute.xlu0 %285
        %287 = vrot.lane.b32.xlu0 %v246, 113
        %v288 = vpop.permute.xlu0 %287
        %vm289 = vcmp.lt.s32.totalorder %v253, 113
        %v290 = vsel %vm289, %v286, %v288
        %v291 = vsel %vm289, %v288, %v286
        %292 = vrot.lane.b32.xlu0 %v244, 112
        %v293 = vpop.permute.xlu0 %292
        %294 = vrot.lane.b32.xlu0 %v246, 112
        %v295 = vpop.permute.xlu0 %294
        %vm296 = vcmp.lt.s32.totalorder %v253, 112
        %v297 = vsel %vm296, %v293, %v295
        %v298 = vsel %vm296, %v295, %v293
        %299 = vrot.lane.b32.xlu0 %v244, 111
        %v300 = vpop.permute.xlu0 %299
        %301 = vrot.lane.b32.xlu0 %v246, 111
        %v302 = vpop.permute.xlu0 %301
        %vm303 = vcmp.lt.s32.totalorder %v253, 111
        %v304 = vsel %vm303, %v300, %v302
        %v305 = vsel %vm303, %v302, %v300
        %v308 = vrot.slane %v263, 4
        %v309 = vrot.slane %v262, 4
        %v314 = vrot.slane %v277, 4
        %v315 = vrot.slane %v276, 4
        %v320 = vrot.slane %v283, 4
        %v321 = vrot.slane %v284, 4
        %v326 = vrot.slane %v297, 4
        %v327 = vrot.slane %v298, 4
        %vm330 = vcmask 1043456
        %v331 = vsel %vm330, %v256, %v308
        %v332 = vsel %vm330, %v255, %v309
        %v333 = vsel %vm330, %v270, %v314
        %v334 = vsel %vm330, %v269, %v315
        %v335 = vsel %vm330, %v244, %v320
        %v336 = vsel %vm330, %v246, %v321
        %v337 = vsel %vm330, %v290, %v326
        %v338 = vsel %vm330, %v291, %v327
        %v349 = vcombine.low %v331, %v332
        %v350 = vcombine.high %v331, %v332
        %v351 = vcombine.low %v333, %v334
        %v352 = vcombine.high %v333, %v334
        %v353 = vcombine.low %v335, %v336
        %v354 = vcombine.high %v335, %v336
        %v355 = vcombine.low %v337, %v338
        %v356 = vcombine.high %v337, %v338
        %v357 = vcombine.low %v304, %v305
        %v367 = vmul.f32 %v243, %v349
        %v368 = vmul.f32 %v243, %v350
        %v369 = vmul.f32 %v243, %v351
        %v370 = vmul.f32 %v243, %v352
        %v371 = vmul.f32 %v243, %v353
        %v372 = vmul.f32 %v243, %v354
        %v373 = vmul.f32 %v243, %v355
        %v374 = vmul.f32 %v243, %v356
        %v375 = vmul.f32 %v243, %v357
        %v385 = vcombine.high %v367, %v367
        %v386 = vcombine.high %v368, %v368
        %v387 = vcombine.high %v369, %v369
        %v388 = vcombine.high %v370, %v370
        %v389 = vcombine.high %v371, %v371
        %v390 = vcombine.high %v372, %v372
        %v391 = vcombine.high %v373, %v373
        %v392 = vcombine.high %v374, %v374
        %v393 = vcombine.high %v375, %v375
        %v403 = vsel %vm330, %v367, 0.0
        %v404 = vrot.slane %v403, 4
        %v405 = vadd.f32 %v403, %v404
        %v406 = vrot.slane %v405, 2
        %v407 = vadd.f32 %v405, %v406
        %v408 = vrot.slane %v407, 1
        %v409 = vadd.f32 %v407, %v408
        %v410 = vsel %vm330, %v385, 0.0
        %v411 = vrot.slane %v410, 4
        %v412 = vadd.f32 %v410, %v411
        %v413 = vrot.slane %v412, 2
        %v414 = vadd.f32 %v412, %v413
        %v415 = vrot.slane %v414, 1
        %v416 = vadd.f32 %v414, %v415
        %v417 = vsel %vm330, %v368, 0.0
        %v418 = vrot.slane %v417, 4
        %v419 = vadd.f32 %v417, %v418
        %v420 = vrot.slane %v419, 2
        %v421 = vadd.f32 %v419, %v420
        %v422 = vrot.slane %v421, 1
        %v423 = vadd.f32 %v421, %v422
        %v424 = vsel %vm330, %v386, 0.0
        %v425 = vrot.slane %v424, 4
        %v426 = vadd.f32 %v424, %v425
        %v427 = vrot.slane %v426, 2
        %v428 = vadd.f32 %v426, %v427
        %v429 = vrot.slane %v428, 1
        %v430 = vadd.f32 %v428, %v429
        %v431 = vsel %vm330, %v369, 0.0
        %v432 = vrot.slane %v431, 4
        %v433 = vadd.f32 %v431, %v432
        %v434 = vrot.slane %v433, 2
        %v435 = vadd.f32 %v433, %v434
        %v436 = vrot.slane %v435, 1
        %v437 = vadd.f32 %v435, %v436
        %v438 = vsel %vm330, %v387, 0.0
        %v439 = vrot.slane %v438, 4
        %v440 = vadd.f32 %v438, %v439
        %v441 = vrot.slane %v440, 2
        %v442 = vadd.f32 %v440, %v441
        %v443 = vrot.slane %v442, 1
        %v444 = vadd.f32 %v442, %v443
        %v445 = vsel %vm330, %v370, 0.0
        %v446 = vrot.slane %v445, 4
        %v447 = vadd.f32 %v445, %v446
        %v448 = vrot.slane %v447, 2
        %v449 = vadd.f32 %v447, %v448
        %v450 = vrot.slane %v449, 1
        %v451 = vadd.f32 %v449, %v450
        %v452 = vsel %vm330, %v388, 0.0
        %v453 = vrot.slane %v452, 4
        %v454 = vadd.f32 %v452, %v453
        %v455 = vrot.slane %v454, 2
        %v456 = vadd.f32 %v454, %v455
        %v457 = vrot.slane %v456, 1
        %v458 = vadd.f32 %v456, %v457
        %v459 = vsel %vm330, %v371, 0.0
        %v460 = vrot.slane %v459, 4
        %v461 = vadd.f32 %v459, %v460
        %v462 = vrot.slane %v461, 2
        %v463 = vadd.f32 %v461, %v462
        %v464 = vrot.slane %v463, 1
        %v465 = vadd.f32 %v463, %v464
        %v466 = vsel %vm330, %v389, 0.0
        %v467 = vrot.slane %v466, 4
        %v468 = vadd.f32 %v466, %v467
        %v469 = vrot.slane %v468, 2
        %v470 = vadd.f32 %v468, %v469
        %v471 = vrot.slane %v470, 1
        %v472 = vadd.f32 %v470, %v471
        %v473 = vsel %vm330, %v372, 0.0
        %v474 = vrot.slane %v473, 4
        %v475 = vadd.f32 %v473, %v474
        %v476 = vrot.slane %v475, 2
        %v477 = vadd.f32 %v475, %v476
        %v478 = vrot.slane %v477, 1
        %v479 = vadd.f32 %v477, %v478
        %v480 = vsel %vm330, %v390, 0.0
        %v481 = vrot.slane %v480, 4
        %v482 = vadd.f32 %v480, %v481
        %v483 = vrot.slane %v482, 2
        %v484 = vadd.f32 %v482, %v483
        %v485 = vrot.slane %v484, 1
        %v486 = vadd.f32 %v484, %v485
        %v487 = vsel %vm330, %v373, 0.0
        %v488 = vrot.slane %v487, 4
        %v489 = vadd.f32 %v487, %v488
        %v490 = vrot.slane %v489, 2
        %v491 = vadd.f32 %v489, %v490
        %v492 = vrot.slane %v491, 1
        %v493 = vadd.f32 %v491, %v492
        %v494 = vsel %vm330, %v391, 0.0
        %v495 = vrot.slane %v494, 4
        %v496 = vadd.f32 %v494, %v495
        %v497 = vrot.slane %v496, 2
        %v498 = vadd.f32 %v496, %v497
        %v499 = vrot.slane %v498, 1
        %v500 = vadd.f32 %v498, %v499
        %v501 = vsel %vm330, %v374, 0.0
        %v502 = vrot.slane %v501, 4
        %v503 = vadd.f32 %v501, %v502
        %v504 = vrot.slane %v503, 2
        %v505 = vadd.f32 %v503, %v504
        %v506 = vrot.slane %v505, 1
        %v507 = vadd.f32 %v505, %v506
        %v508 = vsel %vm330, %v392, 0.0
        %v509 = vrot.slane %v508, 4
        %v510 = vadd.f32 %v508, %v509
        %v511 = vrot.slane %v510, 2
        %v512 = vadd.f32 %v510, %v511
        %v513 = vrot.slane %v512, 1
        %v514 = vadd.f32 %v512, %v513
        %v515 = vsel %vm330, %v375, 0.0
        %v516 = vrot.slane %v515, 4
        %v517 = vadd.f32 %v515, %v516
        %v518 = vrot.slane %v517, 2
        %v519 = vadd.f32 %v517, %v518
        %v520 = vrot.slane %v519, 1
        %v521 = vadd.f32 %v519, %v520
        %v522 = vsel %vm330, %v393, 0.0
        %v523 = vrot.slane %v522, 4
        %v524 = vadd.f32 %v522, %v523
        %v525 = vrot.slane %v524, 2
        %v526 = vadd.f32 %v524, %v525
        %v527 = vrot.slane %v526, 1
        %v528 = vadd.f32 %v526, %v527
        %v533 = vrot.slane %v239, 1
        %v534 = vrot.slane %v240, 1
        %v535 = vrot.slane %v239, 2
        %v536 = vrot.slane %v240, 2
        %v537 = vrot.slane %v239, 3
        %v538 = vrot.slane %v240, 3
        %v539 = vrot.slane %v239, 4
        %v540 = vrot.slane %v240, 4
        %v541 = vrot.slane %v239, 5
        %v542 = vrot.slane %v240, 5
        %v543 = vrot.slane %v239, 6
        %v544 = vrot.slane %v240, 6
        %v545 = vrot.slane %v239, 7
        %v546 = vrot.slane %v240, 7
        %v565 = vmul.f32 %v409, %v239
        %v566 = vmul.f32 %v416, %v240
        %v567 = vmul.f32 %v423, %v533
        %v568 = vmul.f32 %v430, %v534
        %v569 = vmul.f32 %v437, %v535
        %v570 = vmul.f32 %v444, %v536
        %v571 = vmul.f32 %v451, %v537
        %v572 = vmul.f32 %v458, %v538
        %v573 = vmul.f32 %v465, %v539
        %v574 = vmul.f32 %v472, %v540
        %v575 = vmul.f32 %v479, %v541
        %v576 = vmul.f32 %v486, %v542
        %v577 = vmul.f32 %v493, %v543
        %v578 = vmul.f32 %v500, %v544
        %v579 = vmul.f32 %v507, %v545
        %v580 = vmul.f32 %v514, %v546
        %v581 = vmul.f32 %v521, %v241
        %v582 = vmul.f32 %v528, %v242
        %v583 = vxor.u32 %v565, 2147483648
        %v584 = vxor.u32 %v566, 2147483648
        %v585 = vxor.u32 %v567, 2147483648
        %v586 = vxor.u32 %v568, 2147483648
        %v587 = vxor.u32 %v569, 2147483648
        %v588 = vxor.u32 %v570, 2147483648
        %v589 = vxor.u32 %v571, 2147483648
        %v590 = vxor.u32 %v572, 2147483648
        %v591 = vxor.u32 %v573, 2147483648
        %v592 = vxor.u32 %v574, 2147483648
        %v593 = vxor.u32 %v575, 2147483648
        %v594 = vxor.u32 %v576, 2147483648
        %v595 = vxor.u32 %v577, 2147483648
        %v596 = vxor.u32 %v578, 2147483648
        %v597 = vxor.u32 %v579, 2147483648
        %v598 = vxor.u32 %v580, 2147483648
        %v599 = vxor.u32 %v581, 2147483648
        %v600 = vxor.u32 %v582, 2147483648
        %v601 = vmul.f32 %v583, 1.442695
        %v602 = vpow.pop %v601
        %v603 = vmul.f32 %v584, 1.442695
        %v604 = vpow.pop %v603
        %v605 = vmul.f32 %v585, 1.442695
        %v606 = vpow.pop %v605
        %v607 = vmul.f32 %v586, 1.442695
        %v608 = vpow.pop %v607
        %v609 = vmul.f32 %v587, 1.442695
        %v610 = vpow.pop %v609
        %v611 = vmul.f32 %v588, 1.442695
        %v612 = vpow.pop %v611
        %v613 = vmul.f32 %v589, 1.442695
        %v614 = vpow.pop %v613
        %v615 = vmul.f32 %v590, 1.442695
        %v616 = vpow.pop %v615
        %v617 = vmul.f32 %v591, 1.442695
        %v618 = vpow.pop %v617
        %v619 = vmul.f32 %v592, 1.442695
        %v620 = vpow.pop %v619
        %v621 = vmul.f32 %v593, 1.442695
        %v622 = vpow.pop %v621
        %v623 = vmul.f32 %v594, 1.442695
        %v624 = vpow.pop %v623
        %v625 = vmul.f32 %v595, 1.442695
        %v626 = vpow.pop %v625
        %v627 = vmul.f32 %v596, 1.442695
        %v628 = vpow.pop %v627
        %v629 = vmul.f32 %v597, 1.442695
        %v630 = vpow.pop %v629
        %v631 = vmul.f32 %v598, 1.442695
        %v632 = vpow.pop %v631
        %v633 = vmul.f32 %v599, 1.442695
        %v634 = vpow.pop %v633
        %v635 = vmul.f32 %v600, 1.442695
        %v636 = vpow.pop %v635
        %v637 = vadd.f32 %v602, 1.0
        %v638 = vadd.f32 %v604, 1.0
        %v639 = vadd.f32 %v606, 1.0
        %v640 = vadd.f32 %v608, 1.0
        %v641 = vadd.f32 %v610, 1.0
        %v642 = vadd.f32 %v612, 1.0
        %v643 = vadd.f32 %v614, 1.0
        %v644 = vadd.f32 %v616, 1.0
        %v645 = vadd.f32 %v618, 1.0
        %v646 = vadd.f32 %v620, 1.0
        %v647 = vadd.f32 %v622, 1.0
        %v648 = vadd.f32 %v624, 1.0
        %v649 = vadd.f32 %v626, 1.0
        %v650 = vadd.f32 %v628, 1.0
        %v651 = vadd.f32 %v630, 1.0
        %v652 = vadd.f32 %v632, 1.0
        %v653 = vadd.f32 %v634, 1.0
        %v654 = vadd.f32 %v636, 1.0
        %v655 = vrcp.pop %v637
        %v656 = vmul.f32 1.0, %v655
        %v657 = vrcp.pop %v638
        %v658 = vmul.f32 1.0, %v657
        %v659 = vrcp.pop %v639
        %v660 = vmul.f32 1.0, %v659
        %v661 = vrcp.pop %v640
        %v662 = vmul.f32 1.0, %v661
        %v663 = vrcp.pop %v641
        %v664 = vmul.f32 1.0, %v663
        %v665 = vrcp.pop %v642
        %v666 = vmul.f32 1.0, %v665
        %v667 = vrcp.pop %v643
        %v668 = vmul.f32 1.0, %v667
        %v669 = vrcp.pop %v644
        %v670 = vmul.f32 1.0, %v669
        %v671 = vrcp.pop %v645
        %v672 = vmul.f32 1.0, %v671
        %v673 = vrcp.pop %v646
        %v674 = vmul.f32 1.0, %v673
        %v675 = vrcp.pop %v647
        %v676 = vmul.f32 1.0, %v675
        %v677 = vrcp.pop %v648
        %v678 = vmul.f32 1.0, %v677
        %v679 = vrcp.pop %v649
        %v680 = vmul.f32 1.0, %v679
        %v681 = vrcp.pop %v650
        %v682 = vmul.f32 1.0, %v681
        %v683 = vrcp.pop %v651
        %v684 = vmul.f32 1.0, %v683
        %v685 = vrcp.pop %v652
        %v686 = vmul.f32 1.0, %v685
        %v687 = vrcp.pop %v653
        %v688 = vmul.f32 1.0, %v687
        %v689 = vrcp.pop %v654
        %v690 = vmul.f32 1.0, %v689
        %v709 = vrot.slane %v660, 7
        %vm710 = vcmask 1041409
        %v711 = vsel %vm710, %v709, %v656
        %v712 = vrot.slane %v664, 6
        %vm713 = vcmask 1042434
        %v714 = vsel %vm713, %v712, %v711
        %v715 = vrot.slane %v668, 5
        %vm716 = vcmask 1043459
        %v717 = vsel %vm716, %v715, %v714
        %v718 = vrot.slane %v672, 4
        %vm719 = vcmask 1044484
        %v720 = vsel %vm719, %v718, %v717
        %v721 = vrot.slane %v676, 3
        %vm722 = vcmask 1045509
        %v723 = vsel %vm722, %v721, %v720
        %v724 = vrot.slane %v680, 2
        %vm725 = vcmask 1046534
        %v726 = vsel %vm725, %v724, %v723
        %v727 = vrot.slane %v684, 1
        %vm728 = vcmask 1047559
        %v729 = vsel %vm728, %v727, %v726
        %v730 = vrot.slane %v662, 7
        %v731 = vsel %vm710, %v730, %v658
        %v732 = vrot.slane %v666, 6
        %v733 = vsel %vm713, %v732, %v731
        %v734 = vrot.slane %v670, 5
        %v735 = vsel %vm716, %v734, %v733
        %v736 = vrot.slane %v674, 4
        %v737 = vsel %vm719, %v736, %v735
        %v738 = vrot.slane %v678, 3
        %v739 = vsel %vm722, %v738, %v737
        %v740 = vrot.slane %v682, 2
        %v741 = vsel %vm725, %v740, %v739
        %v742 = vrot.slane %v686, 1
        %v743 = vsel %vm728, %v742, %v741
        %748 = vst [vmem:[%s238] sm:$0xff] %v729
        %749 = vst [vmem:[%s238 + $0x8] sm:$0xff] %v743
        %750 = vst [vmem:[%s238 + $0x10] sm:$0x1] %v688
        %751 = vst [vmem:[%s238 + $0x18] sm:$0x1] %v690
        %p752 = scmp.lt.s32.totalorder %s18, 1
        %s753 = scalar_select %p752, %s18, 1
        %s754 = smul.addr %s753, 4
        %s755 = smul.addr %s754, 8
        %s756 = scalar_lea.vmem %s3, %s755
        // Predicated region
        $region45: #{tpu_custom_call.1} parent=31 // pred_check
          %p757 = pneg %p109
        $region46: #{tpu_custom_call.1} parent=31 // pred_check_branch
          %759 = sbr.rel (%p757) target = $region48
        $region47: #{tpu_custom_call.1} parent=31 // pred_region
          _
        $region48: #{tpu_custom_call.1} parent=31 // pred_fallthru
          _
      $region32: #{tpu_custom_call.1} parent=5 // pred_fallthru
        _
      %p760 = scmp.le.s32.totalorder 2, %s13
      // Predicated region
      $region49: #{tpu_custom_call.1} parent=5 // pred_check
        %p761 = pneg %p760
      $region50: #{tpu_custom_call.1} parent=5 // pred_check_branch
        %763 = sbr.rel (%p761) target = $region52
      $region51: #{tpu_custom_call.1} parent=5 // pred_region
        %s764 = ssub.s32 %s13, 2
        // Predicated region
        $region53: #{tpu_custom_call.1} parent=51 // pred_check
          %p765 = pneg %p115
        $region54: #{tpu_custom_call.1} parent=51 // pred_check_branch
          %767 = sbr.rel (%p765) target = $region56
        $region55: #{tpu_custom_call.1} parent=51 // pred_region
          %p768 = scmp.lt.s32.totalorder %s19, 1
          %s769 = scalar_select %p768, %s19, 1
          %s770 = smul.addr %s769, 4
          %s771 = smul.addr %s770, 8
          %s772 = scalar_lea.vmem %s3, %s771
        $region56: #{tpu_custom_call.1} parent=51 // pred_fallthru
          _
      $region52: #{tpu_custom_call.1} parent=5 // pred_fallthru
        _
    $region6: #{tpu_custom_call.1} parent=1 // loop_footer
      %s17 = sadd.s32 1, %s13
    $region7: #{tpu_custom_call.1} parent=1 // loop_footer_branch
      %12 = sbr.rel target = $region3
    $region8: #{tpu_custom_call.1} parent=1 // loop_exit
      _
    %773 = vsyncpa [#allocation3], 1
    %s774 = scalar_lea.sflag [#allocation3], 1
    %775 = vsyncpa %s774, 1
    %776 = vsyncpa [#allocation5], 1
    %s777 = scalar_lea.sflag [#allocation5], 1
    %778 = vsyncpa %s777, 1

</llo_original>
